<compile_context>
chip_gen: v6e
topology: v6e:2x2x1
jax: 0.10.0
libtpu: 0.0.40
codegen_flags: <defaults>
</compile_context>

<pallas_src>
import functools

import jax
import jax.numpy as jnp
from jax.experimental import pallas as pl
from jax.experimental.pallas import tpu as pltpu


OUT_PAD = 128  # lane-dense packed output width (multiple of 128)


# ---------------------------------------------------------------------------
# Fused Pallas kernel
# ---------------------------------------------------------------------------

def _fused_actor_kernel(x_ref, enc_w_ref, enc_b_ref,
                        h_w1_ref, h_b1_ref, h_w2_ref, h_b2_ref,
                        out_ref, *, use_encoder, move_dim, turn_n):
    """encoder -> fused heads -> packed (B, OUT_PAD) output slab."""
    x = x_ref[...]

    if use_encoder:
        enc = jnp.dot(x.astype(enc_w_ref.dtype), enc_w_ref[...],
                      preferred_element_type=jnp.float32)
        enc = jnp.maximum(enc + enc_b_ref[...], 0.0)        # relu(x @ W + b)
    else:
        enc = x.astype(jnp.float32)                          # encodings_feeded

    # Both heads, layer 1 (concatenated weights): (B, 2*HID)
    h = jnp.dot(enc.astype(h_w1_ref.dtype), h_w1_ref[...],
                preferred_element_type=jnp.float32)
    h = jnp.maximum(h + h_b1_ref[...], 0.0)

    # Both heads, layer 2 (block-diagonal, zero-padded to OUT_PAD lanes)
    o = jnp.dot(h.astype(h_w2_ref.dtype), h_w2_ref[...],
                preferred_element_type=jnp.float32)
    o = o + h_b2_ref[...]                                     # (B, OUT_PAD) f32
    # cols [0, move_dim) = mu ; cols [move_dim, move_dim+turn_n) = turn logits
    # cols >= move_dim+turn_n are exactly zero (zero-padded weights/bias).

    out_pad = o.shape[-1]
    turn_lo = move_dim
    turn_hi = move_dim + turn_n

    # Batch-invariant (1, OUT_PAD) column masks; broadcast over batch for free.
    col = jax.lax.broadcasted_iota(jnp.int32, (1, out_pad), 1)
    is_turn = (col >= turn_lo) & (col < turn_hi)               # (1, P) bool
    is_turn_f = is_turn.astype(jnp.float32)                    # (1, P)
    mode_col_f = (col == turn_hi).astype(jnp.float32)          # (1, P)

    # Stable log_softmax over the turn columns only (all math stays f32).
    neg_inf = jnp.float32(-jnp.inf)
    m = jnp.max(jnp.where(is_turn, o, neg_inf), axis=-1, keepdims=True)  # (B,1)
    z = o - m
    p = jnp.where(is_turn, jnp.exp(z), 0.0)
    lse = jnp.log(jnp.sum(p, axis=-1, keepdims=True))          # (B, 1)

    # Categorical mode: first index where logits == row max (PyTorch argmax).
    is_max = is_turn & (o >= m)
    mode_idx = jnp.min(jnp.where(is_max, col, jnp.int32(turn_hi)),
                       axis=-1, keepdims=True) - turn_lo        # (B, 1) int32
    mode_f32 = mode_idx.astype(jnp.float32)   # exact for turn_n < 2^24 (f32 out)

    # Arithmetic packing (no where-chain):
    #   cols [0, move_dim)        : o                -> mu
    #   cols [move_dim, turn_hi)  : o - (m + lse)    -> log_softmax
    #   col  turn_hi              : argmax mode (as f32)
    #   cols > turn_hi            : 0
    packed = o - is_turn_f * (m + lse) + mode_col_f * mode_f32
    out_ref[...] = packed.astype(out_ref.dtype)


# ---------------------------------------------------------------------------
# pallas_call wrapper
# ---------------------------------------------------------------------------

def _round_up(n, m):
    return -(-n // m) * m


def _choose_batch_block(batch, max_block):
    # Aim for exactly two grid steps (v7x 2-TC split); cap so double-buffered
    # x/out tiles stay well under the 32 MiB scoped-VMEM default everywhere.
    half = _round_up(-(-batch // 2), 8)
    return min(max_block, half)


def _fused_actor_call(x, enc_w, enc_b, h_w1, h_b1, h_w2, h_b2, *,
                      use_encoder, move_dim, turn_n,
                      max_batch_block=8192, out_dtype=jnp.float32):
    B, obs = x.shape
    out_pad = h_w2.shape[1]
    assert move_dim + turn_n + 1 <= out_pad, "packed layout overflows OUT_PAD"

    kernel = functools.partial(_fused_actor_kernel, use_encoder=use_encoder,
                               move_dim=move_dim, turn_n=turn_n)
    weights = (enc_w, enc_b, h_w1, h_b1, h_w2, h_b2)
    weight_bytes = sum(int(w.size) * w.dtype.itemsize for w in weights)
    out_itemsize = jnp.dtype(out_dtype).itemsize

    def cost(batch):
        flops = 2 * batch * (h_w1.shape[0] * h_w1.shape[1]
                             + h_w2.shape[0] * h_w2.shape[1])
        if use_encoder:
            flops += 2 * batch * enc_w.shape[0] * enc_w.shape[1]
        return pl.CostEstimate(
            flops=flops,
            transcendentals=batch * (out_pad + 1),
            bytes_accessed=batch * (obs * x.dtype.itemsize
                                    + out_pad * out_itemsize) + weight_bytes)

    if B <= max_batch_block:
        # Small / per-step batch: one invocation, whole arrays resident in VMEM,
        # no grid (avoids the double-buffered pipeline scaffolding of grid=(1,)).
        # TODO(synk): this path is launch/DMA-latency bound; if called once per
        # environment step, hide the weight HBM->VMEM DMA behind preceding JAX
        # work via the cross-pallas_call prefetch pattern (sem + VMEM outputs).
        vmem = lambda: pl.BlockSpec(memory_space=pltpu.MemorySpace.VMEM)
        return pl.pallas_call(
            kernel,
            out_shape=jax.ShapeDtypeStruct((B, out_pad), out_dtype),
            in_specs=[vmem() for _ in range(7)],
            out_specs=vmem(),
            cost_estimate=cost(B),
        )(x, *weights)

    # Large rollout batch: few, big tiles.  Pad B up to a tile multiple (no
    # silent ragged-B fallback), then tile the batch axis; "parallel" lets
    # v7x's two TensorCores split the grid (harmless on single-core v5e/v6e).
    blk = _choose_batch_block(B, max_batch_block)
    B_pad = _round_up(B, blk)
    if B_pad != B:
        x = jnp.concatenate([x, jnp.zeros((B_pad - B, obs), x.dtype)], axis=0)

    def full_spec(a):
        return pl.BlockSpec(a.shape, lambda i: (0,) * a.ndim)

    out = pl.pallas_call(
        kernel,
        out_shape=jax.ShapeDtypeStruct((B_pad, out_pad), out_dtype),
        grid=(B_pad // blk,),
        in_specs=[pl.BlockSpec((blk, obs), lambda i: (i, 0))]
                 + [full_spec(a) for a in weights],
        out_specs=pl.BlockSpec((blk, out_pad), lambda i: (i, 0)),
        compiler_params=pltpu.CompilerParams(
            dimension_semantics=("parallel",)),
        cost_estimate=cost(B_pad),
    )(x, *weights)
    return out[:B] if B_pad != B else out


# ---------------------------------------------------------------------------
# Parameter construction (deterministic, PyTorch-style uniform init) + fusion
# ---------------------------------------------------------------------------

def _init_linear(key, fan_in, fan_out):
    k1, k2 = jax.random.split(key)
    bound = 1.0 / jnp.sqrt(jnp.float32(fan_in))
    w = jax.random.uniform(k1, (fan_in, fan_out), jnp.float32, -bound, bound)
    b = jax.random.uniform(k2, (1, fan_out), jnp.float32, -bound, bound)
    return w, b


def make_params(key, obs_dim, enc_out, hidden, move_dim, turn_n,
                param_dtype=jnp.float32):
    """Build encoder + fused-head parameters.

    param_dtype=jnp.bfloat16 is safe on ALL TPU generations (MXU takes bf16
    everywhere; matmuls accumulate in f32; biases / log_softmax stay f32).
    The demo keeps f32 so the 1e-5 reference asserts hold.
    """
    assert move_dim + turn_n + 1 <= OUT_PAD, "packed layout overflows OUT_PAD"
    keys = jax.random.split(key, 6)
    enc_w, enc_b = _init_linear(keys[0], obs_dim, enc_out)        # state encoder
    mv_w1, mv_b1 = _init_linear(keys[1], enc_out, hidden)         # 'move' MLP
    mv_w2, mv_b2 = _init_linear(keys[2], hidden, move_dim)
    tn_w1, tn_b1 = _init_linear(keys[3], enc_out, hidden)         # 'turn' MLP
    tn_w2, tn_b2 = _init_linear(keys[4], hidden, turn_n)

    # Fused head layer 1: [mv_w1 | tn_w1]
    h_w1 = jnp.concatenate([mv_w1, tn_w1], axis=1)                # (enc, 2*hid)
    h_b1 = jnp.concatenate([mv_b1, tn_b1], axis=1)                # (1, 2*hid)

    # Fused head layer 2: block-diagonal, zero-padded to OUT_PAD lanes
    h_w2 = jnp.zeros((2 * hidden, OUT_PAD), jnp.float32)
    h_w2 = h_w2.at[:hidden, :move_dim].set(mv_w2)
    h_w2 = h_w2.at[hidden:, move_dim:move_dim + turn_n].set(tn_w2)
    h_b2 = jnp.zeros((1, OUT_PAD), jnp.float32)
    h_b2 = h_b2.at[:, :move_dim].set(mv_b2)
    h_b2 = h_b2.at[:, move_dim:move_dim + turn_n].set(tn_b2)

    return {
        "enc_w": enc_w.astype(param_dtype), "enc_b": enc_b,
        "h_w1": h_w1.astype(param_dtype), "h_b1": h_b1,
        "h_w2": h_w2.astype(param_dtype), "h_b2": h_b2,
        "move_logstd": jnp.zeros((move_dim,), jnp.float32),       # nn.Parameter(zeros)
        "move_dim": move_dim, "turn_n": turn_n,
        # unfused f32 copies, used only by the pure-JAX reference check
        "ref": {"enc": (enc_w, enc_b),
                "move": (mv_w1, mv_b1, mv_w2, mv_b2),
                "turn": (tn_w1, tn_b1, tn_w2, tn_b2)},
    }


# ---------------------------------------------------------------------------
# MultiOutputActorNetwork.forward (deterministic=True, non-recurrent encoder)
# ---------------------------------------------------------------------------

def multi_output_actor_forward(params, states, rnn_hxs, masks,
                               encodings_feeded=False, deterministic=True,
                               max_batch_block=8192, out_dtype=jnp.float32):
    del masks  # non-recurrent path: masks unused
    move_dim, turn_n = params["move_dim"], params["turn_n"]

    packed = _fused_actor_call(
        states, params["enc_w"], params["enc_b"],
        params["h_w1"], params["h_b1"], params["h_w2"], params["h_b2"],
        use_encoder=not encodings_feeded,
        move_dim=move_dim, turn_n=turn_n,
        max_batch_block=max_batch_block, out_dtype=out_dtype)

    mu = packed[:, :move_dim]                                      # (B, move_dim)
    logp = packed[:, move_dim:move_dim + turn_n]                   # (B, turn_n)
    mode = packed[:, move_dim + turn_n:move_dim + turn_n + 1]      # (B, 1)
    turn_mode = mode.astype(jnp.int32)

    std = jnp.exp(params["move_logstd"])
    distributions = {
        "move": {"kind": "Normal", "mean": mu, "std": std},        # FixedNormal
        "turn": {"kind": "Categorical", "logits": logp},           # FixedCategorical
    }

    # deterministic=True -> action = distributions.mode()
    action = {
        "move": mu,          # FixedNormal.mode() == mean
        "turn": turn_mode,   # FixedCategorical.mode() == probs.argmax(-1, keepdim=True)
    }
    return action, distributions, rnn_hxs


# ---------------------------------------------------------------------------
# Pure-JAX reference (for correctness check only)
# ---------------------------------------------------------------------------

def _reference_forward(params, states):
    enc_w, enc_b = params["ref"]["enc"]
    enc = jnp.maximum(states @ enc_w + enc_b, 0.0)
    w1, b1, w2, b2 = params["ref"]["move"]
    mu = jnp.maximum(enc @ w1 + b1, 0.0) @ w2 + b2
    w1, b1, w2, b2 = params["ref"]["turn"]
    logits = jnp.maximum(enc @ w1 + b1, 0.0) @ w2 + b2
    logp = jax.nn.log_softmax(logits, axis=1)
    mode = jnp.argmax(logits, axis=-1, keepdims=True).astype(jnp.int32)
    return mu, logp, mode


# ---------------------------------------------------------------------------
# Main
# ---------------------------------------------------------------------------

if __name__ == "__main__":
    B, OBS, ENC, HID, MOVE_DIM, TURN_N = 8, 16, 32, 32, 3, 5

    key = jax.random.PRNGKey(0)
    k_params, k_states = jax.random.split(key)
    params = make_params(k_params, OBS, ENC, HID, MOVE_DIM, TURN_N)

    # --- small batch: single fused invocation, whole arrays in VMEM, no grid ---
    states = jax.random.normal(k_states, (B, OBS), jnp.float32)
    rnn_hxs = jnp.zeros((B, ENC), jnp.float32)
    masks = jnp.ones((B, 1), jnp.float32)

    action, dists, rnn_hxs_out = multi_output_actor_forward(
        params, states, rnn_hxs, masks, deterministic=True)
    jax.block_until_ready(action)
    jax.block_until_ready(dists)

    mu_ref, logp_ref, mode_ref = _reference_forward(params, states)
    assert jnp.allclose(action["move"], mu_ref, atol=1e-5)
    assert jnp.allclose(dists["turn"]["logits"], logp_ref, atol=1e-5)
    assert jnp.array_equal(action["turn"], mode_ref)

    # --- tiled rollout path: ragged B is padded, grid of exactly 2 tiles,
    #     "parallel" splits across v7x's two TensorCores.  max_batch_block is
    #     lowered here only to exercise the tiled path at demo sizes (prod
    #     default is 8192). ---
    B2 = 200
    states2 = jax.random.normal(jax.random.PRNGKey(1), (B2, OBS), jnp.float32)
    action2, dists2, _ = multi_output_actor_forward(
        params, states2, jnp.zeros((B2, ENC), jnp.float32),
        jnp.ones((B2, 1), jnp.float32), deterministic=True, max_batch_block=128)
    jax.block_until_ready(action2)

    mu_ref2, logp_ref2, mode_ref2 = _reference_forward(params, states2)
    assert jnp.allclose(action2["move"], mu_ref2, atol=1e-5)
    assert jnp.allclose(dists2["turn"]["logits"], logp_ref2, atol=1e-5)
    assert jnp.array_equal(action2["turn"], mode_ref2)

    print("KERNEL_OK")
</pallas_src>

<mosaic_0001>
module attributes {stable_mosaic.version = 11 : i64} {
  func.func @_fused_actor_kernel(%arg0: memref<8x16xf32, #tpu.memory_space<vmem>>, %arg1: memref<16x32xf32, #tpu.memory_space<vmem>>, %arg2: memref<1x32xf32, #tpu.memory_space<vmem>>, %arg3: memref<32x64xf32, #tpu.memory_space<vmem>>, %arg4: memref<1x64xf32, #tpu.memory_space<vmem>>, %arg5: memref<64x128xf32, #tpu.memory_space<vmem>>, %arg6: memref<1x128xf32, #tpu.memory_space<vmem>>, %arg7: memref<8x128xf32, #tpu.memory_space<vmem>>) attributes {dimension_semantics = [], scalar_prefetch = 0 : i64, scratch_operands = 0 : i64, tpu.core_type = #tpu.core_type<tc>} {
    %c0 = arith.constant 0 : index
    %c0_0 = arith.constant 0 : index
    %0 = vector.load %arg0[%c0, %c0_0] : memref<8x16xf32, #tpu.memory_space<vmem>>, vector<8x16xf32>
    %c0_1 = arith.constant 0 : index
    %c0_2 = arith.constant 0 : index
    %1 = vector.load %arg1[%c0_1, %c0_2] : memref<16x32xf32, #tpu.memory_space<vmem>>, vector<16x32xf32>
    %cst = arith.constant dense<0.000000e+00> : vector<8x32xf32>
    %2 = tpu.matmul %0, %1, %cst {dimension_numbers = #tpu.dot_dimension_numbers<[1], [0], [0], [1], [0, 0, 1, 1], [], []>} : vector<8x16xf32>, vector<16x32xf32>, vector<8x32xf32> -> vector<8x32xf32>
    %c0_3 = arith.constant 0 : index
    %c0_4 = arith.constant 0 : index
    %3 = vector.load %arg2[%c0_3, %c0_4] : memref<1x32xf32, #tpu.memory_space<vmem>>, vector<1x32xf32>
    %4 = vector.broadcast %3 : vector<1x32xf32> to vector<8x32xf32>
    %5 = arith.addf %2, %4 : vector<8x32xf32>
    %cst_5 = arith.constant 0.000000e+00 : f32
    %6 = vector.broadcast %cst_5 : f32 to vector<8x32xf32>
    %7 = arith.maximumf %5, %6 : vector<8x32xf32>
    %c0_6 = arith.constant 0 : index
    %c0_7 = arith.constant 0 : index
    %8 = vector.load %arg3[%c0_6, %c0_7] : memref<32x64xf32, #tpu.memory_space<vmem>>, vector<32x64xf32>
    %cst_8 = arith.constant dense<0.000000e+00> : vector<8x64xf32>
    %9 = tpu.matmul %7, %8, %cst_8 {dimension_numbers = #tpu.dot_dimension_numbers<[1], [0], [0], [1], [0, 0, 1, 1], [], []>} : vector<8x32xf32>, vector<32x64xf32>, vector<8x64xf32> -> vector<8x64xf32>
    %c0_9 = arith.constant 0 : index
    %c0_10 = arith.constant 0 : index
    %10 = vector.load %arg4[%c0_9, %c0_10] : memref<1x64xf32, #tpu.memory_space<vmem>>, vector<1x64xf32>
    %11 = vector.broadcast %10 : vector<1x64xf32> to vector<8x64xf32>
    %12 = arith.addf %9, %11 : vector<8x64xf32>
    %cst_11 = arith.constant 0.000000e+00 : f32
    %13 = vector.broadcast %cst_11 : f32 to vector<8x64xf32>
    %14 = arith.maximumf %12, %13 : vector<8x64xf32>
    %c0_12 = arith.constant 0 : index
    %c0_13 = arith.constant 0 : index
    %15 = vector.load %arg5[%c0_12, %c0_13] : memref<64x128xf32, #tpu.memory_space<vmem>>, vector<64x128xf32>
    %cst_14 = arith.constant dense<0.000000e+00> : vector<8x128xf32>
    %16 = tpu.matmul %14, %15, %cst_14 {dimension_numbers = #tpu.dot_dimension_numbers<[1], [0], [0], [1], [0, 0, 1, 1], [], []>} : vector<8x64xf32>, vector<64x128xf32>, vector<8x128xf32> -> vector<8x128xf32>
    %c0_15 = arith.constant 0 : index
    %c0_16 = arith.constant 0 : index
    %17 = vector.load %arg6[%c0_15, %c0_16] : memref<1x128xf32, #tpu.memory_space<vmem>>, vector<1x128xf32>
    %18 = vector.broadcast %17 : vector<1x128xf32> to vector<8x128xf32>
    %19 = arith.addf %16, %18 : vector<8x128xf32>
    %20 = tpu.iota {dimensions = array<i32: 1>} : vector<1x128xi32>
    %c3_i32 = arith.constant 3 : i32
    %21 = vector.broadcast %c3_i32 : i32 to vector<1x128xi32>
    %22 = arith.cmpi sge, %20, %21 : vector<1x128xi32>
    %c8_i32 = arith.constant 8 : i32
    %23 = vector.broadcast %c8_i32 : i32 to vector<1x128xi32>
    %24 = arith.cmpi slt, %20, %23 : vector<1x128xi32>
    %25 = arith.andi %22, %24 : vector<1x128xi1>
    %26 = arith.extui %25 : vector<1x128xi1> to vector<1x128xi32>
    %27 = arith.sitofp %26 : vector<1x128xi32> to vector<1x128xf32>
    %c8_i32_17 = arith.constant 8 : i32
    %28 = vector.broadcast %c8_i32_17 : i32 to vector<1x128xi32>
    %29 = arith.cmpi eq, %20, %28 : vector<1x128xi32>
    %30 = arith.extui %29 : vector<1x128xi1> to vector<1x128xi32>
    %31 = arith.sitofp %30 : vector<1x128xi32> to vector<1x128xf32>
    %cst_18 = arith.constant 0xFF800000 : f32
    %32 = vector.shape_cast %25 : vector<1x128xi1> to vector<1x128xi1>
    %33 = vector.broadcast %32 : vector<1x128xi1> to vector<8x128xi1>
    %34 = vector.broadcast %cst_18 : f32 to vector<8x128xf32>
    %35 = arith.select %33, %19, %34 : vector<8x128xi1>, vector<8x128xf32>
    %cst_19 = arith.constant dense<0xFF800000> : vector<8xf32>
    %36 = vector.multi_reduction <maximumf>, %35, %cst_19 [1] : vector<8x128xf32> to vector<8xf32>
    %37 = vector.shape_cast %36 : vector<8xf32> to vector<8x1xf32>
    %38 = vector.broadcast %37 : vector<8x1xf32> to vector<8x128xf32>
    %39 = arith.subf %19, %38 : vector<8x128xf32>
    %40 = math.exp %39 : vector<8x128xf32>
    %cst_20 = arith.constant 0.000000e+00 : f32
    %41 = vector.shape_cast %25 : vector<1x128xi1> to vector<1x128xi1>
    %42 = vector.broadcast %41 : vector<1x128xi1> to vector<8x128xi1>
    %43 = vector.broadcast %cst_20 : f32 to vector<8x128xf32>
    %44 = arith.select %42, %40, %43 : vector<8x128xi1>, vector<8x128xf32>
    %cst_21 = arith.constant dense<0.000000e+00> : vector<8xf32>
    %45 = vector.multi_reduction <add>, %44, %cst_21 [1] : vector<8x128xf32> to vector<8xf32>
    %46 = vector.shape_cast %45 : vector<8xf32> to vector<8x1xf32>
    %47 = math.log %46 : vector<8x1xf32>
    %48 = vector.broadcast %37 : vector<8x1xf32> to vector<8x128xf32>
    %49 = arith.cmpf oge, %19, %48 : vector<8x128xf32>
    %50 = vector.broadcast %25 : vector<1x128xi1> to vector<8x128xi1>
    %51 = arith.andi %50, %49 : vector<8x128xi1>
    %c8_i32_22 = arith.constant 8 : i32
    %52 = vector.shape_cast %20 : vector<1x128xi32> to vector<1x128xi32>
    %53 = vector.broadcast %52 : vector<1x128xi32> to vector<8x128xi32>
    %54 = vector.broadcast %c8_i32_22 : i32 to vector<8x128xi32>
    %55 = arith.select %51, %53, %54 : vector<8x128xi1>, vector<8x128xi32>
    %cst_23 = arith.constant dense<2147483647> : vector<8xi32>
    %56 = vector.multi_reduction <minsi>, %55, %cst_23 [1] : vector<8x128xi32> to vector<8xi32>
    %57 = vector.shape_cast %56 : vector<8xi32> to vector<8x1xi32>
    %c3_i32_24 = arith.constant 3 : i32
    %58 = vector.broadcast %c3_i32_24 : i32 to vector<8x1xi32>
    %59 = arith.subi %57, %58 : vector<8x1xi32>
    %60 = arith.sitofp %59 : vector<8x1xi32> to vector<8x1xf32>
    %61 = arith.addf %37, %47 : vector<8x1xf32>
    %62 = vector.broadcast %27 : vector<1x128xf32> to vector<8x128xf32>
    %63 = vector.broadcast %61 : vector<8x1xf32> to vector<8x128xf32>
    %64 = arith.mulf %62, %63 : vector<8x128xf32>
    %65 = arith.subf %19, %64 : vector<8x128xf32>
    %66 = vector.broadcast %31 : vector<1x128xf32> to vector<8x128xf32>
    %67 = vector.broadcast %60 : vector<8x1xf32> to vector<8x128xf32>
    %68 = arith.mulf %66, %67 : vector<8x128xf32>
    %69 = arith.addf %65, %68 : vector<8x128xf32>
    %c0_25 = arith.constant 0 : index
    %c0_26 = arith.constant 0 : index
    %70 = vector.load %arg7[%c0_25, %c0_26] : memref<8x128xf32, #tpu.memory_space<vmem>>, vector<8x128xf32>
    tpu.vector_store %arg7[%c0_25, %c0_26], %69 {strides = array<i32>} : memref<8x128xf32, #tpu.memory_space<vmem>>, vector<8x128xf32>,
    return
  }
}

</mosaic_0001>

<llo_original>
// kernel: tpu_custom_call.1
$region0: #{tpu_custom_call.1}
  #allocation0 [shape = 'u32[]', space=smem, size = 0x4, offset = 0x4, fixed_abs, tag = 'smem constant byte address 0x4 - core index']
  #allocation1 [shape = 'u32[144,128]{1,0:T(1,128)}', space=vmem, size = 0x12000, scoped, tag = 'internal scratch']
  %s0 = inlined_call_operand.hbm [shape: f32[8,16], index: 0, kind: input, shape index: {}]
  %s1 = inlined_call_operand.hbm [shape: f32[16,32], index: 1, kind: input, shape index: {}]
  %s2 = inlined_call_operand.vmem [shape: f32[1,32], index: 2, kind: input, shape index: {}]
  %s3 = inlined_call_operand.hbm [shape: f32[32,64], index: 3, kind: input, shape index: {}]
  %s4 = inlined_call_operand.vmem [shape: f32[1,64], index: 4, kind: input, shape index: {}]
  %s5 = inlined_call_operand.hbm [shape: f32[64,128], index: 5, kind: input, shape index: {}]
  %s6 = inlined_call_operand.vmem [shape: f32[1,128], index: 6, kind: input, shape index: {}]
  %s7 = inlined_call_operand.hbm [shape: f32[8,128], index: 7, kind: output, shape index: {}]
  %s8 = sld [smem:[#allocation0]]
  $region54: #{tpu_custom_call.1} parent=0
    _
  %s10 = ssub.s32 1, %s8
  %s11 = scalar_select 0, %s10, %s8
  $region1: #{tpu_custom_call.1} parent=0
    #allocation2 [shape = 'u8[4096]{0}', space=vmem, size = 0x1000, scoped, tag = 'input window, operand 0, single buffered']
    #allocation3 [shape = 's32[1]{0}', space=sflag, size = 0x4, scoped, tag = 'scoped memory for tpu_custom_call.1']
    #allocation4 [shape = 's32[1]{0}', space=sflag, size = 0x4, scoped, tag = 'scoped memory for tpu_custom_call.1']
    #allocation5 [shape = 'u8[8192]{0}', space=vmem, size = 0x2000, scoped, tag = 'input window, operand 1, single buffered']
    #allocation6 [shape = 's32[1]{0}', space=sflag, size = 0x4, scoped, tag = 'scoped memory for tpu_custom_call.1']
    #allocation7 [shape = 'u8[16384]{0}', space=vmem, size = 0x4000, scoped, tag = 'input window, operand 3, single buffered']
    #allocation8 [shape = 'u8[32768]{0}', space=vmem, size = 0x8000, scoped, tag = 'input window, operand 5, single buffered']
    #allocation9 [shape = 's32[1]{0}', space=sflag, size = 0x4, scoped, tag = 'scoped memory for tpu_custom_call.1']
    #allocation10 [shape = 'u8[4096]{0}', space=vmem, size = 0x1000, scoped, tag = 'output window, operand 0, single buffered']
    %12 = vsyncpa [#allocation3], 0
    %13 = vsyncpa [#allocation6], 0
    %14 = vsyncpa [#allocation9], 0
    %15 = vsyncpa [#allocation4], 0
    // Predicated region
    $region2: #{tpu_custom_call.1} parent=1 // pred_check
      _
    $region3: #{tpu_custom_call.1} parent=1 // pred_check_branch
      %17 = sbr.rel (0) target = $region5
    $region4: #{tpu_custom_call.1} parent=1 // pred_region
      %s19 = ssub.s32 128, 128
      %20 = vsyncadd [#allocation3], %s19
      %s22 = sshll.u32 [#allocation2], 4
      %s23 = int_to_ptr.vmem [resolvable:$true] %s22
      %25 = dma.hbm_to_vmem [thread:$0]  %s0, 128, %s23, [#allocation3]
    $region5: #{tpu_custom_call.1} parent=1 // pred_fallthru
      _
    // Predicated region
    $region6: #{tpu_custom_call.1} parent=1 // pred_check
      _
    $region7: #{tpu_custom_call.1} parent=1 // pred_check_branch
      %27 = sbr.rel (0) target = $region9
    $region8: #{tpu_custom_call.1} parent=1 // pred_region
      %s29 = ssub.s32 256, 256
      %30 = vsyncadd [#allocation6], %s29
      %s31 = sshll.u32 [#allocation5], 4
      %s32 = int_to_ptr.vmem [resolvable:$true] %s31
      %37 = dma.hbm_to_vmem [thread:$0]  %s1, 256, %s32, [#allocation6], 128, 128, 8
    $region9: #{tpu_custom_call.1} parent=1 // pred_fallthru
      _
    // Predicated region
    $region10: #{tpu_custom_call.1} parent=1 // pred_check
      _
    $region11: #{tpu_custom_call.1} parent=1 // pred_check_branch
      %39 = sbr.rel (0) target = $region13
    $region12: #{tpu_custom_call.1} parent=1 // pred_region
      _
    $region13: #{tpu_custom_call.1} parent=1 // pred_fallthru
      _
    // Predicated region
    $region14: #{tpu_custom_call.1} parent=1 // pred_check
      _
    $region15: #{tpu_custom_call.1} parent=1 // pred_check_branch
      %41 = sbr.rel (0) target = $region17
    $region16: #{tpu_custom_call.1} parent=1 // pred_region
      %s43 = ssub.s32 512, 512
      %44 = vsyncadd [#allocation6], %s43
      %s45 = sshll.u32 [#allocation7], 4
      %s46 = int_to_ptr.vmem [resolvable:$true] %s45
      %51 = dma.hbm_to_vmem [thread:$0]  %s3, 512, %s46, [#allocation6], 128, 128, 8
    $region17: #{tpu_custom_call.1} parent=1 // pred_fallthru
      _
    // Predicated region
    $region18: #{tpu_custom_call.1} parent=1 // pred_check
      _
    $region19: #{tpu_custom_call.1} parent=1 // pred_check_branch
      %53 = sbr.rel (0) target = $region21
    $region20: #{tpu_custom_call.1} parent=1 // pred_region
      _
    $region21: #{tpu_custom_call.1} parent=1 // pred_fallthru
      _
    // Predicated region
    $region22: #{tpu_custom_call.1} parent=1 // pred_check
      _
    $region23: #{tpu_custom_call.1} parent=1 // pred_check_branch
      %55 = sbr.rel (0) target = $region25
    $region24: #{tpu_custom_call.1} parent=1 // pred_region
      %s57 = ssub.s32 1024, 1024
      %58 = vsyncadd [#allocation9], %s57
      %s59 = sshll.u32 [#allocation8], 4
      %s60 = int_to_ptr.vmem [resolvable:$true] %s59
      %65 = dma.hbm_to_vmem [thread:$0]  %s5, 1024, %s60, [#allocation9], 128, 128, 8
    $region25: #{tpu_custom_call.1} parent=1 // pred_fallthru
      _
    // Predicated region
    $region26: #{tpu_custom_call.1} parent=1 // pred_check
      _
    $region27: #{tpu_custom_call.1} parent=1 // pred_check_branch
      %67 = sbr.rel (0) target = $region29
    $region28: #{tpu_custom_call.1} parent=1 // pred_region
      _
    $region29: #{tpu_custom_call.1} parent=1 // pred_fallthru
      _
    // Predicated region
    $region30: #{tpu_custom_call.1} parent=1 // pred_check
      _
    $region31: #{tpu_custom_call.1} parent=1 // pred_check_branch
      %69 = sbr.rel (0) target = $region33
    $region32: #{tpu_custom_call.1} parent=1 // pred_region
      %70 = dma.done [#allocation3], 128
    $region33: #{tpu_custom_call.1} parent=1 // pred_fallthru
      _
    // Predicated region
    $region34: #{tpu_custom_call.1} parent=1 // pred_check
      _
    $region35: #{tpu_custom_call.1} parent=1 // pred_check_branch
      %72 = sbr.rel (0) target = $region37
    $region36: #{tpu_custom_call.1} parent=1 // pred_region
      %73 = dma.done [#allocation6], 256
    $region37: #{tpu_custom_call.1} parent=1 // pred_fallthru
      _
    // Predicated region
    $region38: #{tpu_custom_call.1} parent=1 // pred_check
      _
    $region39: #{tpu_custom_call.1} parent=1 // pred_check_branch
      %75 = sbr.rel (0) target = $region41
    $region40: #{tpu_custom_call.1} parent=1 // pred_region
      %76 = dma.done [#allocation6], 512
    $region41: #{tpu_custom_call.1} parent=1 // pred_fallthru
      _
    // Predicated region
    $region42: #{tpu_custom_call.1} parent=1 // pred_check
      _
    $region43: #{tpu_custom_call.1} parent=1 // pred_check_branch
      %78 = sbr.rel (0) target = $region45
    $region44: #{tpu_custom_call.1} parent=1 // pred_region
      %79 = dma.done [#allocation9], 1024
    $region45: #{tpu_custom_call.1} parent=1 // pred_fallthru
      _
    %v80 = vld [vmem:[#allocation2] sm:$0xff]
    %v81 = vld [vmem:[#allocation5] sm:$0xff]
    %v82 = vld [vmem:[#allocation5 + $0x8] sm:$0xff]
    %v83 = vld [vmem:[%s2] sm:$0x1]
    %v85 = vlaneseq
    %v86 = vshrl.u32 %v85, 7
    %v87 = vsub.s32 0, %v86
    %v88 = vrot.slane %v83, %v87
    %vm90 = vcmask 130048
    %v92 = vsel %vm90, %v80, 0
    %94 = vmatprep.subr.mxu0 0.0
    %95 = vmatpush1.msra.mxu0 0.0
    %96 = vmatprep.subr.mxu0 0.0
    %97 = vmatpush1.msra.mxu0 0.0
    %98 = vmatprep.subr.mxu0 0.0
    %99 = vmatpush1.msra.mxu0 0.0
    %100 = vmatprep.subr.mxu0 0.0
    %101 = vmatpush1.msra.mxu0 0.0
    %102 = vmatprep.subr.mxu0 0.0
    %103 = vmatpush1.msra.mxu0 0.0
    %104 = vmatprep.subr.mxu0 0.0
    %105 = vmatpush1.msra.mxu0 0.0
    %106 = vmatprep.subr.mxu0 0.0
    %107 = vmatpush1.msra.mxu0 0.0
    %108 = vmatprep.subr.mxu0 0.0
    %109 = vmatpush1.msra.mxu0 0.0
    %110 = vmatprep.subr.mxu0 0.0
    %111 = vmatpush1.msra.mxu0 0.0
    %112 = vmatprep.subr.mxu0 0.0
    %113 = vmatpush1.msra.mxu0 0.0
    %114 = vmatprep.subr.mxu0 0.0
    %115 = vmatpush1.msra.mxu0 0.0
    %116 = vmatprep.subr.mxu0 0.0
    %117 = vmatpush1.msra.mxu0 0.0
    %118 = vmatprep.subr.mxu0 0.0
    %119 = vmatpush1.msra.mxu0 0.0
    %120 = vmatprep.subr.mxu0 0.0
    %121 = vmatpush1.msra.mxu0 0.0
    %122 = vmatprep.subr.mxu0 0.0
    %123 = vmatpush1.msra.mxu0 %v82
    %124 = vmatprep.subr.mxu0 0.0
    %125 = vmatpush1.msra.mxu0 %v81
    %126 = vmatprep.subr.mxu0 0.0
    %127 = vmatpush2.msra.mxu0 0.0
    %128 = vmatprep.subr.mxu0 0.0
    %129 = vmatpush2.msra.mxu0 0.0
    %130 = vmatprep.subr.mxu0 0.0
    %131 = vmatpush2.msra.mxu0 0.0
    %132 = vmatprep.subr.mxu0 0.0
    %133 = vmatpush2.msra.mxu0 0.0
    %134 = vmatprep.subr.mxu0 0.0
    %135 = vmatpush2.msra.mxu0 0.0
    %136 = vmatprep.subr.mxu0 0.0
    %137 = vmatpush2.msra.mxu0 0.0
    %138 = vmatprep.subr.mxu0 0.0
    %139 = vmatpush2.msra.mxu0 0.0
    %140 = vmatprep.subr.mxu0 0.0
    %141 = vmatpush2.msra.mxu0 0.0
    %142 = vmatprep.subr.mxu0 0.0
    %143 = vmatpush2.msra.mxu0 0.0
    %144 = vmatprep.subr.mxu0 0.0
    %145 = vmatpush2.msra.mxu0 0.0
    %146 = vmatprep.subr.mxu0 0.0
    %147 = vmatpush2.msra.mxu0 0.0
    %148 = vmatprep.subr.mxu0 0.0
    %149 = vmatpush2.msra.mxu0 0.0
    %150 = vmatprep.subr.mxu0 0.0
    %151 = vmatpush2.msra.mxu0 0.0
    %152 = vmatprep.subr.mxu0 0.0
    %153 = vmatpush2.msra.mxu0 0.0
    %154 = vmatprep.subr.mxu0 0.0
    %155 = vmatpush2.msra.mxu0 0.0
    %156 = vmatprep.subr.mxu0 0.0
    %157 = vmatpush2.msra.mxu0 0.0
    %158 = vmatprep.mubr.f32.mxu0 0.0
    %159 = vmatmul.mubr.f32.gmra.mxu0 %v92
    %v160 = vpop.f32.mrf.mxu0
    %v161 = vadd.f32 %v88, %v160
    %v162 = vpop.f32.mrf.mxu0
    %163 = vdwg.mxu0
    %v164 = vmax.f32 %v161, 0.0
    %v165 = vld [vmem:[#allocation7] sm:$0xff]
    %v166 = vld [vmem:[#allocation7 + $0x8] sm:$0xff]
    %v167 = vld [vmem:[#allocation7 + $0x10] sm:$0xff]
    %v168 = vld [vmem:[#allocation7 + $0x18] sm:$0xff]
    %v169 = vld [vmem:[%s4] sm:$0x1]
    %v171 = vlaneseq
    %v172 = vshrl.u32 %v171, 7
    %v173 = vsub.s32 0, %v172
    %v174 = vrot.slane %v169, %v173
    %vm176 = vcmask 261120
    %v178 = vsel %vm176, %v164, 0
    %180 = vmatprep.subr.mxu0 0.0
    %181 = vmatpush1.msra.mxu0 0.0
    %182 = vmatprep.subr.mxu0 0.0
    %183 = vmatpush1.msra.mxu0 0.0
    %184 = vmatprep.subr.mxu0 0.0
    %185 = vmatpush1.msra.mxu0 0.0
    %186 = vmatprep.subr.mxu0 0.0
    %187 = vmatpush1.msra.mxu0 0.0
    %188 = vmatprep.subr.mxu0 0.0
    %189 = vmatpush1.msra.mxu0 0.0
    %190 = vmatprep.subr.mxu0 0.0
    %191 = vmatpush1.msra.mxu0 0.0
    %192 = vmatprep.subr.mxu0 0.0
    %193 = vmatpush1.msra.mxu0 0.0
    %194 = vmatprep.subr.mxu0 0.0
    %195 = vmatpush1.msra.mxu0 0.0
    %196 = vmatprep.subr.mxu0 0.0
    %197 = vmatpush1.msra.mxu0 0.0
    %198 = vmatprep.subr.mxu0 0.0
    %199 = vmatpush1.msra.mxu0 0.0
    %200 = vmatprep.subr.mxu0 0.0
    %201 = vmatpush1.msra.mxu0 0.0
    %202 = vmatprep.subr.mxu0 0.0
    %203 = vmatpush1.msra.mxu0 0.0
    %204 = vmatprep.subr.mxu0 0.0
    %205 = vmatpush1.msra.mxu0 %v168
    %206 = vmatprep.subr.mxu0 0.0
    %207 = vmatpush1.msra.mxu0 %v167
    %208 = vmatprep.subr.mxu0 0.0
    %209 = vmatpush1.msra.mxu0 %v166
    %210 = vmatprep.subr.mxu0 0.0
    %211 = vmatpush1.msra.mxu0 %v165
    %212 = vmatprep.subr.mxu0 0.0
    %213 = vmatpush2.msra.mxu0 0.0
    %214 = vmatprep.subr.mxu0 0.0
    %215 = vmatpush2.msra.mxu0 0.0
    %216 = vmatprep.subr.mxu0 0.0
    %217 = vmatpush2.msra.mxu0 0.0
    %218 = vmatprep.subr.mxu0 0.0
    %219 = vmatpush2.msra.mxu0 0.0
    %220 = vmatprep.subr.mxu0 0.0
    %221 = vmatpush2.msra.mxu0 0.0
    %222 = vmatprep.subr.mxu0 0.0
    %223 = vmatpush2.msra.mxu0 0.0
    %224 = vmatprep.subr.mxu0 0.0
    %225 = vmatpush2.msra.mxu0 0.0
    %226 = vmatprep.subr.mxu0 0.0
    %227 = vmatpush2.msra.mxu0 0.0
    %228 = vmatprep.subr.mxu0 0.0
    %229 = vmatpush2.msra.mxu0 0.0
    %230 = vmatprep.subr.mxu0 0.0
    %231 = vmatpush2.msra.mxu0 0.0
    %232 = vmatprep.subr.mxu0 0.0
    %233 = vmatpush2.msra.mxu0 0.0
    %234 = vmatprep.subr.mxu0 0.0
    %235 = vmatpush2.msra.mxu0 0.0
    %236 = vmatprep.subr.mxu0 0.0
    %237 = vmatpush2.msra.mxu0 0.0
    %238 = vmatprep.subr.mxu0 0.0
    %239 = vmatpush2.msra.mxu0 0.0
    %240 = vmatprep.subr.mxu0 0.0
    %241 = vmatpush2.msra.mxu0 0.0
    %242 = vmatprep.subr.mxu0 0.0
    %243 = vmatpush2.msra.mxu0 0.0
    %244 = vmatprep.mubr.f32.mxu0 0.0
    %245 = vmatmul.mubr.f32.gmra.mxu0 %v178
    %v246 = vpop.f32.mrf.mxu0
    %v247 = vadd.f32 %v174, %v246
    %v248 = vpop.f32.mrf.mxu0
    %249 = vdwg.mxu0
    %v250 = vmax.f32 %v247, 0.0
    %v251 = vld [vmem:[#allocation8] sm:$0xff]
    %v252 = vld [vmem:[#allocation8 + $0x8] sm:$0xff]
    %v253 = vld [vmem:[#allocation8 + $0x10] sm:$0xff]
    %v254 = vld [vmem:[#allocation8 + $0x18] sm:$0xff]
    %v255 = vld [vmem:[#allocation8 + $0x20] sm:$0xff]
    %v256 = vld [vmem:[#allocation8 + $0x28] sm:$0xff]
    %v257 = vld [vmem:[#allocation8 + $0x30] sm:$0xff]
    %v258 = vld [vmem:[#allocation8 + $0x38] sm:$0xff]
    %v259 = vld [vmem:[%s6] sm:$0x1]
    %v261 = vlaneseq
    %v262 = vshrl.u32 %v261, 7
    %v263 = vsub.s32 0, %v262
    %v264 = vrot.slane %v259, %v263
    %vm266 = vcmask 523264
    %v268 = vsel %vm266, %v250, 0
    %270 = vmatprep.subr.mxu0 0.0
    %271 = vmatpush1.msra.mxu0 0.0
    %272 = vmatprep.subr.mxu0 0.0
    %273 = vmatpush1.msra.mxu0 0.0
    %274 = vmatprep.subr.mxu0 0.0
    %275 = vmatpush1.msra.mxu0 0.0
    %276 = vmatprep.subr.mxu0 0.0
    %277 = vmatpush1.msra.mxu0 0.0
    %278 = vmatprep.subr.mxu0 0.0
    %279 = vmatpush1.msra.mxu0 0.0
    %280 = vmatprep.subr.mxu0 0.0
    %281 = vmatpush1.msra.mxu0 0.0
    %282 = vmatprep.subr.mxu0 0.0
    %283 = vmatpush1.msra.mxu0 0.0
    %284 = vmatprep.subr.mxu0 0.0
    %285 = vmatpush1.msra.mxu0 0.0
    %286 = vmatprep.subr.mxu0 0.0
    %287 = vmatpush1.msra.mxu0 %v258
    %288 = vmatprep.subr.mxu0 0.0
    %289 = vmatpush1.msra.mxu0 %v257
    %290 = vmatprep.subr.mxu0 0.0
    %291 = vmatpush1.msra.mxu0 %v256
    %292 = vmatprep.subr.mxu0 0.0
    %293 = vmatpush1.msra.mxu0 %v255
    %294 = vmatprep.subr.mxu0 0.0
    %295 = vmatpush1.msra.mxu0 %v254
    %296 = vmatprep.subr.mxu0 0.0
    %297 = vmatpush1.msra.mxu0 %v253
    %298 = vmatprep.subr.mxu0 0.0
    %299 = vmatpush1.msra.mxu0 %v252
    %300 = vmatprep.subr.mxu0 0.0
    %301 = vmatpush1.msra.mxu0 %v251
    %302 = vmatprep.subr.mxu0 0.0
    %303 = vmatpush2.msra.mxu0 0.0
    %304 = vmatprep.subr.mxu0 0.0
    %305 = vmatpush2.msra.mxu0 0.0
    %306 = vmatprep.subr.mxu0 0.0
    %307 = vmatpush2.msra.mxu0 0.0
    %308 = vmatprep.subr.mxu0 0.0
    %309 = vmatpush2.msra.mxu0 0.0
    %310 = vmatprep.subr.mxu0 0.0
    %311 = vmatpush2.msra.mxu0 0.0
    %312 = vmatprep.subr.mxu0 0.0
    %313 = vmatpush2.msra.mxu0 0.0
    %314 = vmatprep.subr.mxu0 0.0
    %315 = vmatpush2.msra.mxu0 0.0
    %316 = vmatprep.subr.mxu0 0.0
    %317 = vmatpush2.msra.mxu0 0.0
    %318 = vmatprep.subr.mxu0 0.0
    %319 = vmatpush2.msra.mxu0 0.0
    %320 = vmatprep.subr.mxu0 0.0
    %321 = vmatpush2.msra.mxu0 0.0
    %322 = vmatprep.subr.mxu0 0.0
    %323 = vmatpush2.msra.mxu0 0.0
    %324 = vmatprep.subr.mxu0 0.0
    %325 = vmatpush2.msra.mxu0 0.0
    %326 = vmatprep.subr.mxu0 0.0
    %327 = vmatpush2.msra.mxu0 0.0
    %328 = vmatprep.subr.mxu0 0.0
    %329 = vmatpush2.msra.mxu0 0.0
    %330 = vmatprep.subr.mxu0 0.0
    %331 = vmatpush2.msra.mxu0 0.0
    %332 = vmatprep.subr.mxu0 0.0
    %333 = vmatpush2.msra.mxu0 0.0
    %334 = vmatprep.mubr.f32.mxu0 0.0
    %335 = vmatmul.mubr.f32.gmra.mxu0 %v268
    %v336 = vpop.f32.mrf.mxu0
    %v337 = vadd.f32 %v264, %v336
    %v338 = vpop.f32.mrf.mxu0
    %339 = vdwg.mxu0
    %v340 = vlaneseq
    %v341 = vand.u32 %v340, 127
    %vm342 = vcmp.ge.s32.totalorder %v341, 3
    %vm343 = vcmp.lt.s32.totalorder %v341, 8
    %vm344 = vmand %vm342, %vm343
    %v345 = vsel %vm344, 1, 0
    %v346 = vcvt.s32.f32 %v345
    %vm347 = vcmp.eq.s32.totalorder %v341, 8
    %v348 = vsel %vm347, 1, 0
    %v349 = vcvt.s32.f32 %v348
    %vm350 = vcmp.eq.s32.totalorder %v345, 1
    %v351 = vsel %vm350, %v337, -inf
    %352 = vmax.xlane.f32.xlu0 %v351
    %v353 = vpop.xlane.xlu0 %352
    %v354 = vsub.f32 %v337, %v353
    %v355 = vmul.f32 %v354, 1.442695
    %v356 = vpow.pop %v355
    %v357 = vsel %vm350, %v356, 0.0
    %358 = vadd.xlane.f32.xlu0 %v357
    %v359 = vpop.xlane.xlu0 %358
    %v360 = vlog2.pop %v359
    %v361 = vmul.f32 %v360, 0.6931472
    %vm362 = vcmp.ge.f32.partialorder %v337, %v353
    %vm363 = vmand %vm350, %vm362
    %v364 = vsel %vm363, %v341, 8
    %v365 = vand.u32 %v364, 65535
    %v366 = vshra.s32 %v364, 16
    %v367 = vcvt.s32.f32 %v365
    %v368 = vcvt.s32.f32 %v366
    %369 = vmin.xlane.f32.xlu0 %v368
    %v370 = vpop.xlane.xlu0 %369
    %vm371 = vcmp.eq.f32.partialorder %v368, %v370
    %v372 = vsel %vm371, %v367, inf
    %373 = vmin.xlane.f32.xlu0 %v372
    %v374 = vpop.xlane.xlu0 %373
    %v375 = vcvt.f32.s32 %v374
    %v376 = vcvt.f32.s32 %v370
    %v377 = vshll.u32 %v376, 16
    %v378 = vadd.s32 %v377, %v375
    %v379 = vsub.s32 %v378, 3
    %v380 = vcvt.s32.f32 %v379
    %v381 = vadd.f32 %v353, %v361
    %v382 = vmul.f32 %v346, %v381
    %v383 = vsub.f32 %v337, %v382
    %v384 = vmul.f32 %v349, %v380
    %v385 = vadd.f32 %v383, %v384
    %386 = vst [vmem:[#allocation10] sm:$0xff] %v385
    // Predicated region
    $region46: #{tpu_custom_call.1} parent=1 // pred_check
      _
    $region47: #{tpu_custom_call.1} parent=1 // pred_check_branch
      %388 = sbr.rel (0) target = $region49
    $region48: #{tpu_custom_call.1} parent=1 // pred_region
      %s390 = ssub.s32 128, 128
      %391 = vsyncadd [#allocation4], %s390
      %s393 = sshll.u32 [#allocation10], 4
      %s394 = int_to_ptr.vmem [resolvable:$true] %s393
      %396 = dma.vmem_to_hbm [thread:$0]  %s394, 128, %s7, [#allocation4]
    $region49: #{tpu_custom_call.1} parent=1 // pred_fallthru
      _
    // Predicated region
    $region50: #{tpu_custom_call.1} parent=1 // pred_check
      _
    $region51: #{tpu_custom_call.1} parent=1 // pred_check_branch
      %398 = sbr.rel (0) target = $region53
    $region52: #{tpu_custom_call.1} parent=1 // pred_region
      %399 = dma.done [#allocation4], 128
    $region53: #{tpu_custom_call.1} parent=1 // pred_fallthru
      _
    %400 = vsyncpa [#allocation3], 1
    %401 = vsyncpa [#allocation6], 1
    %402 = vsyncpa [#allocation9], 1
    %403 = vsyncpa [#allocation4], 1

</llo_original>
